<compile_context>
chip_gen: v5e
topology: v5e:2x2
jax: 0.10.0
libtpu: 0.0.40
codegen_flags: <defaults>
</compile_context>

<pallas_src>
import math
import functools

import jax
import jax.numpy as jnp
import numpy as np
from jax.experimental import pallas as pl
from jax.experimental.pallas import tpu as pltpu


def lambda_init_fn(depth):
    return 0.8 - 0.6 * math.exp(-0.3 * depth)


def _vmem_limit_bytes():
    # Generation-aware scoped-VMEM limit: ~3/4 of physical per-core VMEM,
    # capped at 100 MiB (so v5e/v6e get ~96 MiB, v7x stays at 48 MiB).
    try:
        info = pltpu.get_tpu_info()
        cap = getattr(info, "vmem_capacity_bytes", None)
        if cap:
            return int(min(cap * 3 // 4, 100 * 1024 * 1024))
    except Exception:
        pass
    return 48 * 1024 * 1024


_VMEM_LIMIT = _vmem_limit_bytes()


def _pick_tile(dim, candidates):
    for c in candidates:
        if dim >= c and dim % c == 0:
            return c
    return dim  # fall back to the full (always-valid) dim


# ---------------------------------------------------------------------------
# Lane-dense tiled matmul kernel (shared by all three projection pallas_calls)
# ---------------------------------------------------------------------------

def _mm_kernel(a_ref, b_ref, o_ref, acc_ref):
    """acc(+)= a @ b over the grid's last (reduction) axis; store at the last step."""
    @pl.when(pl.program_id(2) == 0)
    def _():
        acc_ref[...] = jnp.zeros_like(acc_ref)

    acc_ref[...] += jax.lax.dot_general(
        a_ref[...], b_ref[...],
        dimension_numbers=(((1,), (0,)), ((), ())),
        preferred_element_type=jnp.float32)

    @pl.when(pl.program_id(2) == pl.num_programs(2) - 1)
    def _():
        o_ref[...] = acc_ref[...].astype(o_ref.dtype)


def pallas_matmul(a, b, *, out_dtype=jnp.bfloat16):
    """(M, K) @ (K, N) -> (M, N) with f32 accumulation on the MXU."""
    M, K = a.shape
    K2, N = b.shape
    assert K == K2
    tm = _pick_tile(M, (512, 256, 128))
    tn = _pick_tile(N, (512, 256, 128))

    itemsize = a.dtype.itemsize
    # Single-K-step path whenever the double-buffered blocks fit comfortably;
    # removes the accumulator round-trip and per-step grid overhead.
    budget = min(24 * 1024 * 1024, _VMEM_LIMIT // 2)
    if (tm * K + K * tn) * itemsize * 2 + tm * tn * 8 <= budget:
        tk = K
    else:
        tk = _pick_tile(K, (1024, 512, 256, 128))
    grid = (M // tm, N // tn, K // tk)

    flops = 2 * M * N * K
    bytes_accessed = (M * K + K * N) * itemsize + M * N * jnp.dtype(out_dtype).itemsize

    return pl.pallas_call(
        _mm_kernel,
        grid=grid,
        in_specs=[
            pl.BlockSpec((tm, tk), lambda i, j, k: (i, k)),
            pl.BlockSpec((tk, tn), lambda i, j, k: (k, j)),
        ],
        out_specs=pl.BlockSpec((tm, tn), lambda i, j, k: (i, j)),
        out_shape=jax.ShapeDtypeStruct((M, N), out_dtype),
        scratch_shapes=[pltpu.VMEM((tm, tn), jnp.float32)],
        compiler_params=pltpu.CompilerParams(
            dimension_semantics=("parallel", "parallel", "arbitrary"),
            vmem_limit_bytes=_VMEM_LIMIT),
        cost_estimate=pl.CostEstimate(flops=int(flops), transcendentals=0,
                                      bytes_accessed=int(bytes_accessed)),
    )(a, b)


# ---------------------------------------------------------------------------
# Differential cross-attention core (flash-style online softmax over KV tiles)
# ---------------------------------------------------------------------------

def _diff_attn_kernel(lam_ref, q_ref, k_ref, v_ref, o_ref,
                      m_sc, l_sc, acc_sc, *,
                      head_dim, shared_k, scaling, lambda_init, eps):
    # q_ref : (tq, 2*Dh)  -- both differential components of this head (adjacent cols)
    # k_ref : (tk, 2*Dh)  if n_rep == 1 (components 2h, 2h+1 adjacent)
    #         (tk, Dh)    if n_rep  > 1 (both components map to the same kv head)
    # v_ref : (tk, 2*Dh)
    # o_ref : (tq, 2*Dh)  -- written straight into the flat (BT, E) output slab
    ki = pl.program_id(3)

    @pl.when(ki == 0)
    def _():
        m_sc[...] = jnp.full_like(m_sc, -jnp.inf)
        l_sc[...] = jnp.zeros_like(l_sc)
        acc_sc[...] = jnp.zeros_like(acc_sc)

    Dh = head_dim
    q = q_ref[...]
    q_parts = (q[:, :Dh], q[:, Dh:])
    if shared_k:
        kb = k_ref[...]                    # same kv head for both components
        k_parts = (kb, kb)
    else:
        kb = k_ref[...]
        k_parts = (kb[:, :Dh], kb[:, Dh:])
    v = v_ref[...]                         # (tk, 2*Dh)

    for c in range(2):
        s = jax.lax.dot_general(
            q_parts[c], k_parts[c],
            dimension_numbers=(((1,), (1,)), ((), ())),
            preferred_element_type=jnp.float32) * scaling          # (tq, tk)
        # NOTE: torch.nan_to_num(scores) dropped -- identity for finite inputs.
        m_prev = m_sc[c]                                           # (tq, 1)
        m_new = jnp.maximum(m_prev, jnp.max(s, axis=-1, keepdims=True))
        alpha = jnp.exp(m_prev - m_new)
        # TODO(synk): on v6e/v7x the exp below could run in bf16 (EUP has bf16) for
        # ~2x EUP throughput; kept in f32 here to stay well within tolerance on all
        # generations (v5e has no bf16 EUP path anyway).
        p = jnp.exp(s - m_new)
        l_sc[c] = alpha * l_sc[c] + jnp.sum(p, axis=-1, keepdims=True)
        acc_sc[c] = alpha * acc_sc[c] + jnp.dot(
            p.astype(v.dtype), v, preferred_element_type=jnp.float32)
        m_sc[c] = m_new

    @pl.when(ki == pl.num_programs(3) - 1)
    def _():
        lam = lam_ref[0]
        a1 = acc_sc[0] / l_sc[0]                 # exact divide (cancellation follows)
        a2 = acc_sc[1] / l_sc[1]
        res = a1 - lam * a2                      # differential combine
        var = jnp.mean(res * res, axis=-1, keepdims=True)   # RMSNorm (no affine)
        res = res * jax.lax.rsqrt(var + eps)
        o_ref[...] = (res * (1.0 - lambda_init)).astype(o_ref.dtype)


def pallas_diff_attention(q2d, kv2d, lambda_full, *, batch, seq, num_heads,
                          num_kv_heads, n_rep, head_dim, scaling, lambda_init,
                          out_dtype=jnp.bfloat16):
    """q2d: (B*T, E); kv2d: (B*S, 2*E/nr) = [K | V] columns -> (B*T, E)."""
    BT, _ = q2d.shape
    Dh = head_dim
    H, Kv = num_heads, num_kv_heads
    dv = 2 * Dh
    T = S = seq
    tq = _pick_tile(T, (512, 256, 128))
    tk = _pick_tile(S, (1024, 512, 256, 128))
    nqt, nkt = T // tq, S // tk
    # H leading so the v7x 2-TensorCore split stays even for B == 1 / odd B.
    grid = (H, batch, nqt, nkt)

    shared_k = n_rep > 1
    kernel = functools.partial(_diff_attn_kernel, head_dim=Dh, shared_k=shared_k,
                               scaling=scaling, lambda_init=lambda_init, eps=1e-5)

    q_spec = pl.BlockSpec((tq, dv), lambda h, b, qi, ki: (b * nqt + qi, h))
    if shared_k:
        # (2h)//n_rep == (2h+1)//n_rep for n_rep > 1: one (tk, Dh) block serves both.
        k_spec = pl.BlockSpec((tk, Dh),
                              lambda h, b, qi, ki: (b * nkt + ki, (2 * h) // n_rep))
    else:
        # heads 2h and 2h+1 are adjacent Dh-wide column groups -> one (tk, 2Dh) block.
        k_spec = pl.BlockSpec((tk, dv), lambda h, b, qi, ki: (b * nkt + ki, h))
    # V region starts at column E/nr = Kv blocks of width 2*Dh.
    v_spec = pl.BlockSpec((tk, dv),
                          lambda h, b, qi, ki: (b * nkt + ki, Kv + h // n_rep))
    o_spec = pl.BlockSpec((tq, dv), lambda h, b, qi, ki: (b * nqt + qi, h))

    flops = 12 * batch * H * T * S * Dh          # 2x QK + 2x PV (f32 acc)
    transcendentals = 2 * batch * H * T * S
    k_bytes = tk * (Dh if shared_k else dv) * 2
    bytes_accessed = (q2d.size * 2 + BT * H * dv * 2
                      + batch * H * nkt * (k_bytes + tk * dv * 2))

    return pl.pallas_call(
        kernel,
        grid=grid,
        in_specs=[
            pl.BlockSpec(memory_space=pltpu.MemorySpace.SMEM),   # lambda_full (1,)
            q_spec, k_spec, v_spec,
        ],
        out_specs=o_spec,
        out_shape=jax.ShapeDtypeStruct((BT, H * dv), out_dtype),
        scratch_shapes=[
            pltpu.VMEM((2, tq, 1), jnp.float32),     # running max (per component)
            pltpu.VMEM((2, tq, 1), jnp.float32),     # running denominator
            pltpu.VMEM((2, tq, dv), jnp.float32),    # running numerator
        ],
        compiler_params=pltpu.CompilerParams(
            dimension_semantics=("parallel", "parallel", "parallel", "arbitrary"),
            vmem_limit_bytes=_VMEM_LIMIT),
        cost_estimate=pl.CostEstimate(flops=int(flops),
                                      transcendentals=int(transcendentals),
                                      bytes_accessed=int(bytes_accessed)),
    )(lambda_full, q2d, kv2d, kv2d)


# ---------------------------------------------------------------------------
# Module wrapper (parameter setup; all heavy math runs in the Pallas kernels)
# ---------------------------------------------------------------------------

class MultiheadDiffAttnCrossV2Pallas:
    def __init__(self, embed_dim, depth, num_heads, key,
                 model_parallel_size=1, decoder_kv_attention_heads=None):
        self.embed_dim = embed_dim
        self.num_heads = num_heads // model_parallel_size
        self.num_kv_heads = (decoder_kv_attention_heads // model_parallel_size
                             if decoder_kv_attention_heads is not None
                             else num_heads // model_parallel_size)
        self.n_rep = self.num_heads // self.num_kv_heads
        self.head_dim = embed_dim // num_heads // 2
        self.scaling = self.head_dim ** (-0.5)
        self.lambda_init = lambda_init_fn(depth)

        ks = jax.random.split(key, 8)
        E, Dh, nr = embed_dim, self.head_dim, self.n_rep
        s = 0.05
        # f32 master weights (torch nn.Linear layout (out, in)) -- used by the reference.
        self.Wq = (jax.random.normal(ks[0], (E, E)) * s).astype(jnp.float32)
        self.Wk = (jax.random.normal(ks[1], (E // nr, E)) * s).astype(jnp.float32)
        self.Wv = (jax.random.normal(ks[2], (E // nr, E)) * s).astype(jnp.float32)
        self.Wo = (jax.random.normal(ks[3], (E, E)) * s).astype(jnp.float32)
        self.lambda_q1 = (jax.random.normal(ks[4], (Dh,)) * 0.1).astype(jnp.float32)
        self.lambda_k1 = (jax.random.normal(ks[5], (Dh,)) * 0.1).astype(jnp.float32)
        self.lambda_q2 = (jax.random.normal(ks[6], (Dh,)) * 0.1).astype(jnp.float32)
        self.lambda_k2 = (jax.random.normal(ks[7], (Dh,)) * 0.1).astype(jnp.float32)

        # Kernel-layout bf16 weights, built ONCE at init (no per-call relayout):
        #   flat (in, out) matrices, K and V fused so x is read once by one matmul.
        self.WqT = self.Wq.T.astype(jnp.bfloat16)                               # (E, E)
        self.WkvT = jnp.concatenate([self.Wk, self.Wv], axis=0).T.astype(jnp.bfloat16)  # (E, 2E/nr)
        self.WoT = self.Wo.T.astype(jnp.bfloat16)                               # (E, E)

    def __call__(self, x, q_enc, rel_pos=None, attn_mask=None):
        # TODO(synk): rel_pos bias, vis/return_2 outputs and the H/W 4-D view path
        # of the PyTorch module are not wired up (defaults used here).
        B, T, E = x.shape
        H, Kv, Dh, nr = self.num_heads, self.num_kv_heads, self.head_dim, self.n_rep

        xq2d = q_enc.reshape(B * T, E).astype(jnp.bfloat16)
        xkv2d = x.reshape(B * T, E).astype(jnp.bfloat16)

        # Lane-dense flat projections (K/V fused -> x streamed from HBM once).
        q2d = pallas_matmul(xq2d, self.WqT)          # (B*T, E)          bf16
        kv2d = pallas_matmul(xkv2d, self.WkvT)       # (B*T, 2E/nr)      bf16

        lambda_1 = jnp.exp(jnp.sum(self.lambda_q1 * self.lambda_k1))
        lambda_2 = jnp.exp(jnp.sum(self.lambda_q2 * self.lambda_k2))
        lambda_full = (lambda_1 - lambda_2 + self.lambda_init).astype(jnp.float32).reshape(1)

        attn2d = pallas_diff_attention(
            q2d, kv2d, lambda_full, batch=B, seq=T, num_heads=H, num_kv_heads=Kv,
            n_rep=nr, head_dim=Dh, scaling=self.scaling,
            lambda_init=self.lambda_init)            # (B*T, E) bf16, head-concat layout

        out2d = pallas_matmul(attn2d, self.WoT, out_dtype=jnp.float32)   # (B*T, E)
        return out2d.reshape(B, T, E)


# ---------------------------------------------------------------------------
# Pure-JAX f32 reference (mirrors the PyTorch forward) for the correctness check
# ---------------------------------------------------------------------------

def reference_forward(m, x, q_enc):
    B, T, E = x.shape
    H, Kv, Dh, nr = m.num_heads, m.num_kv_heads, m.head_dim, m.n_rep
    S = T
    q = q_enc.reshape(B * T, E) @ m.Wq.T
    k = x.reshape(B * S, E) @ m.Wk.T
    v = x.reshape(B * S, E) @ m.Wv.T
    q = q.reshape(B, T, 2 * H, Dh).transpose(0, 2, 1, 3) * m.scaling
    k = jnp.repeat(k.reshape(B, S, 2 * Kv, Dh).transpose(0, 2, 1, 3), nr, axis=1)
    v = jnp.repeat(v.reshape(B, S, Kv, 2 * Dh).transpose(0, 2, 1, 3), nr, axis=1)
    aw = jnp.einsum("bhtd,bhsd->bhts", q, k)
    aw = jax.nn.softmax(aw, axis=-1)
    lam = (jnp.exp(jnp.sum(m.lambda_q1 * m.lambda_k1))
           - jnp.exp(jnp.sum(m.lambda_q2 * m.lambda_k2)) + m.lambda_init)
    aw = aw.reshape(B, H, 2, T, S)
    aw = aw[:, :, 0] - lam * aw[:, :, 1]
    attn = jnp.einsum("bhts,bhsd->bhtd", aw, v)
    attn = attn * jax.lax.rsqrt(jnp.mean(attn * attn, -1, keepdims=True) + 1e-5)
    attn = attn * (1 - m.lambda_init)
    attn = attn.transpose(0, 2, 1, 3).reshape(B * T, H * 2 * Dh)
    return (attn @ m.Wo.T).reshape(B, T, E)


if __name__ == "__main__":
    key = jax.random.PRNGKey(0)
    k_param, k_param2, k_x, k_q = jax.random.split(key, 4)

    embed_dim, num_heads, depth = 64, 4, 1
    bsz, seq = 2, 16

    x = jax.random.normal(k_x, (bsz, seq, embed_dim), dtype=jnp.float32)
    q_enc = jax.random.normal(k_q, (bsz, seq, embed_dim), dtype=jnp.float32)

    # Config 1: n_rep == 1 (num_kv_heads == num_heads)
    mod = MultiheadDiffAttnCrossV2Pallas(embed_dim, depth, num_heads, k_param)
    out = jax.block_until_ready(mod(x, q_enc))
    ref = reference_forward(mod, x, q_enc)
    np.testing.assert_allclose(np.asarray(out), np.asarray(ref), rtol=5e-2, atol=1e-2)

    # Config 2: grouped KV (n_rep == 2) exercises the shared-K BlockSpec path
    mod2 = MultiheadDiffAttnCrossV2Pallas(embed_dim, depth, num_heads, k_param2,
                                          decoder_kv_attention_heads=2)
    out2 = jax.block_until_ready(mod2(x, q_enc))
    ref2 = reference_forward(mod2, x, q_enc)
    np.testing.assert_allclose(np.asarray(out2), np.asarray(ref2), rtol=5e-2, atol=1e-2)

    print("KERNEL_OK")
</pallas_src>

<mosaic_0001>
module attributes {stable_mosaic.version = 11 : i64} {
  func.func @_mm_kernel(%arg0: i32, %arg1: i32, %arg2: i32, %arg3: memref<32x64xbf16, #tpu.memory_space<vmem>>, %arg4: memref<64x64xbf16, #tpu.memory_space<vmem>>, %arg5: memref<32x64xbf16, #tpu.memory_space<vmem>>, %arg6: memref<32x64xf32, #tpu.memory_space<vmem>>) attributes {dimension_semantics = [#tpu.dimension_semantics<parallel>, #tpu.dimension_semantics<parallel>, #tpu.dimension_semantics<arbitrary>], iteration_bounds = array<i64: 1, 1, 1>, scalar_prefetch = 0 : i64, scratch_operands = 1 : i64, tpu.core_type = #tpu.core_type<tc>, window_params = [{transform_indices = @transform_0, window_bounds = array<i64: 32, 64>}, {transform_indices = @transform_1, window_bounds = array<i64: 64, 64>}, {transform_indices = @transform_2, window_bounds = array<i64: 32, 64>}]} {
    %c0_i32 = arith.constant 0 : i32
    %0 = arith.cmpi eq, %arg2, %c0_i32 : i32
    %1 = arith.extui %0 : i1 to i32
    %c0_i32_0 = arith.constant 0 : i32
    %2 = arith.cmpi ne, %1, %c0_i32_0 : i32
    scf.if %2 {
      %cst_10 = arith.constant 0.000000e+00 : f32
      %12 = vector.broadcast %cst_10 : f32 to vector<32x64xf32>
      %c0_11 = arith.constant 0 : index
      %c0_12 = arith.constant 0 : index
      %13 = vector.load %arg6[%c0_11, %c0_12] : memref<32x64xf32, #tpu.memory_space<vmem>>, vector<32x64xf32>
      tpu.vector_store %arg6[%c0_11, %c0_12], %12 {strides = array<i32>} : memref<32x64xf32, #tpu.memory_space<vmem>>, vector<32x64xf32>,
    } else {
    }
    %c0 = arith.constant 0 : index
    %c0_1 = arith.constant 0 : index
    %3 = vector.load %arg6[%c0, %c0_1] : memref<32x64xf32, #tpu.memory_space<vmem>>, vector<32x64xf32>
    %c0_2 = arith.constant 0 : index
    %c0_3 = arith.constant 0 : index
    %4 = vector.load %arg3[%c0_2, %c0_3] : memref<32x64xbf16, #tpu.memory_space<vmem>>, vector<32x64xbf16>
    %c0_4 = arith.constant 0 : index
    %c0_5 = arith.constant 0 : index
    %5 = vector.load %arg4[%c0_4, %c0_5] : memref<64x64xbf16, #tpu.memory_space<vmem>>, vector<64x64xbf16>
    %cst = arith.constant dense<0.000000e+00> : vector<32x64xf32>
    %6 = tpu.matmul %4, %5, %cst {dimension_numbers = #tpu.dot_dimension_numbers<[1], [0], [0], [1], [0, 0, 1, 1], [], []>} : vector<32x64xbf16>, vector<64x64xbf16>, vector<32x64xf32> -> vector<32x64xf32>
    %7 = arith.addf %3, %6 : vector<32x64xf32>
    %c0_6 = arith.constant 0 : index
    %c0_7 = arith.constant 0 : index
    %8 = vector.load %arg6[%c0_6, %c0_7] : memref<32x64xf32, #tpu.memory_space<vmem>>, vector<32x64xf32>
    tpu.vector_store %arg6[%c0_6, %c0_7], %7 {strides = array<i32>} : memref<32x64xf32, #tpu.memory_space<vmem>>, vector<32x64xf32>,
    %c0_i32_8 = arith.constant 0 : i32
    %9 = arith.cmpi eq, %arg2, %c0_i32_8 : i32
    %10 = arith.extui %9 : i1 to i32
    %c0_i32_9 = arith.constant 0 : i32
    %11 = arith.cmpi ne, %10, %c0_i32_9 : i32
    scf.if %11 {
      %c0_10 = arith.constant 0 : index
      %c0_11 = arith.constant 0 : index
      %12 = vector.load %arg6[%c0_10, %c0_11] : memref<32x64xf32, #tpu.memory_space<vmem>>, vector<32x64xf32>
      %13 = arith.truncf %12 : vector<32x64xf32> to vector<32x64xbf16>
      %c0_12 = arith.constant 0 : index
      %c0_13 = arith.constant 0 : index
      %14 = vector.load %arg5[%c0_12, %c0_13] : memref<32x64xbf16, #tpu.memory_space<vmem>>, vector<32x64xbf16>
      tpu.vector_store %arg5[%c0_12, %c0_13], %13 {strides = array<i32>} : memref<32x64xbf16, #tpu.memory_space<vmem>>, vector<32x64xbf16>,
    } else {
    }
    return
  }
  func.func @transform_0(%arg0: i32, %arg1: i32, %arg2: i32) -> (i32, i32) {
    %c0_i32 = arith.constant 0 : i32
    return %arg0, %arg2 : i32, i32
  }
  func.func @transform_1(%arg0: i32, %arg1: i32, %arg2: i32) -> (i32, i32) {
    %c0_i32 = arith.constant 0 : i32
    return %arg2, %arg1 : i32, i32
  }
  func.func @transform_2(%arg0: i32, %arg1: i32, %arg2: i32) -> (i32, i32) {
    %c0_i32 = arith.constant 0 : i32
    return %arg0, %arg1 : i32, i32
  }
}

</mosaic_0001>

<llo_original>
// kernel: tpu_custom_call.1
$region0: #{tpu_custom_call.1}
  #allocation0 [shape = 'u32[]', space=smem, size = 0x4, offset = 0x4, fixed_abs, tag = 'smem constant byte address 0x4 - core index']
  #allocation1 [shape = 'u32[72,128]{1,0:T(1,128)}', space=vmem, size = 0x9000, scoped, tag = 'internal scratch']
  #allocation2 [shape = 'f32[32,64]{1,0:T(8,128)}', space=vmem, size = 0x4000, scoped, tag = 'scratch operand']
  %s0 = inlined_call_operand.hbm [shape: bf16[32,64], index: 0, kind: input, shape index: {}]
  %s1 = inlined_call_operand.hbm [shape: bf16[64,64], index: 1, kind: input, shape index: {}]
  %s2 = inlined_call_operand.hbm [shape: bf16[32,64], index: 2, kind: output, shape index: {}]
  %s3 = sld [smem:[#allocation0]]
  $region34: #{tpu_custom_call.1} parent=0
    _
  %s5 = ssub.s32 1, %s3
  %s6 = scalar_select 0, %s5, %s3
  $region1: #{tpu_custom_call.1} parent=0
    #allocation3 [shape = 'u8[8192]{0}', space=vmem, size = 0x2000, scoped, tag = 'input window, operand 0, single buffered']
    #allocation4 [shape = 's32[1]{0}', space=sflag, size = 0x4, scoped, tag = 'scoped memory for tpu_custom_call.1']
    #allocation5 [shape = 's32[1]{0}', space=sflag, size = 0x4, scoped, tag = 'scoped memory for tpu_custom_call.1']
    #allocation6 [shape = 'u8[16384]{0}', space=vmem, size = 0x4000, scoped, tag = 'input window, operand 1, single buffered']
    #allocation7 [shape = 's32[1]{0}', space=sflag, size = 0x4, scoped, tag = 'scoped memory for tpu_custom_call.1']
    #allocation8 [shape = 'u8[8192]{0}', space=vmem, size = 0x2000, scoped, tag = 'output window, operand 0, single buffered']
    %7 = vsyncpa [#allocation4], 0
    %8 = vsyncpa [#allocation7], 0
    %9 = vsyncpa [#allocation5], 0
    // Predicated region
    $region2: #{tpu_custom_call.1} parent=1 // pred_check
      _
    $region3: #{tpu_custom_call.1} parent=1 // pred_check_branch
      %11 = sbr.rel (0) target = $region5
    $region4: #{tpu_custom_call.1} parent=1 // pred_region
      %13 = vsyncadd [#allocation4], 0
      %s14 = sshll.u32 %s0, 4
      %s15 = int_to_ptr.hbm [resolvable:$true] %s14
      %s16 = sshll.u32 [#allocation3], 4
      %s17 = int_to_ptr.vmem [resolvable:$true] %s16
      %22 = dma.hbm_to_vmem [thread:$0]  %s15, 256, %s17, [#allocation4], 64, 64, 4
    $region5: #{tpu_custom_call.1} parent=1 // pred_fallthru
      _
    // Predicated region
    $region6: #{tpu_custom_call.1} parent=1 // pred_check
      _
    $region7: #{tpu_custom_call.1} parent=1 // pred_check_branch
      %24 = sbr.rel (0) target = $region9
    $region8: #{tpu_custom_call.1} parent=1 // pred_region
      %26 = vsyncadd [#allocation7], 0
      %s27 = sshll.u32 %s1, 4
      %s28 = int_to_ptr.hbm [resolvable:$true] %s27
      %s29 = sshll.u32 [#allocation6], 4
      %s30 = int_to_ptr.vmem [resolvable:$true] %s29
      %35 = dma.hbm_to_vmem [thread:$0]  %s28, 512, %s30, [#allocation7], 64, 64, 4
    $region9: #{tpu_custom_call.1} parent=1 // pred_fallthru
      _
    // Predicated region
    $region10: #{tpu_custom_call.1} parent=1 // pred_check
      _
    $region11: #{tpu_custom_call.1} parent=1 // pred_check_branch
      %37 = sbr.rel (0) target = $region13
    $region12: #{tpu_custom_call.1} parent=1 // pred_region
      %39 = dma.done [#allocation4], 256
    $region13: #{tpu_custom_call.1} parent=1 // pred_fallthru
      _
    // Predicated region
    $region14: #{tpu_custom_call.1} parent=1 // pred_check
      _
    $region15: #{tpu_custom_call.1} parent=1 // pred_check_branch
      %41 = sbr.rel (0) target = $region17
    $region16: #{tpu_custom_call.1} parent=1 // pred_region
      %43 = dma.done [#allocation7], 512
    $region17: #{tpu_custom_call.1} parent=1 // pred_fallthru
      _
    %p45 = scmp.eq.s32.totalorder 0, 0
    // Predicated region
    $region18: #{tpu_custom_call.1} parent=1 // pred_check
      %p46 = pneg %p45
    $region19: #{tpu_custom_call.1} parent=1 // pred_check_branch
      %48 = sbr.rel (%p46) target = $region21
    $region20: #{tpu_custom_call.1} parent=1 // pred_region
      %vm49 = vcmask 523264
      %50 = vst.msk [vmem:[#allocation2] sm:$0xff] %vm49, 0.0
      %51 = vst.msk [vmem:[#allocation2 + $0x8] sm:$0xff] %vm49, 0.0
      %52 = vst.msk [vmem:[#allocation2 + $0x10] sm:$0xff] %vm49, 0.0
      %53 = vst.msk [vmem:[#allocation2 + $0x18] sm:$0xff] %vm49, 0.0
    $region21: #{tpu_custom_call.1} parent=1 // pred_fallthru
      _
    %v54 = vld [vmem:[#allocation2] sm:$0xff]
    %v55 = vld [vmem:[#allocation2 + $0x8] sm:$0xff]
    %v56 = vld [vmem:[#allocation2 + $0x10] sm:$0xff]
    %v57 = vld [vmem:[#allocation2 + $0x18] sm:$0xff]
    %v58 = vld [vmem:[#allocation3] sm:$0xf]
    %v59 = vld [vmem:[#allocation3 + $0x4] sm:$0xf]
    %v60 = vld [vmem:[#allocation3 + $0x8] sm:$0xf]
    %v61 = vld [vmem:[#allocation3 + $0xc] sm:$0xf]
    %v62 = vld [vmem:[#allocation6] sm:$0xf]
    %v63 = vld [vmem:[#allocation6 + $0x4] sm:$0xf]
    %v64 = vld [vmem:[#allocation6 + $0x8] sm:$0xf]
    %v65 = vld [vmem:[#allocation6 + $0xc] sm:$0xf]
    %v66 = vld [vmem:[#allocation6 + $0x10] sm:$0xf]
    %v67 = vld [vmem:[#allocation6 + $0x14] sm:$0xf]
    %v68 = vld [vmem:[#allocation6 + $0x18] sm:$0xf]
    %v69 = vld [vmem:[#allocation6 + $0x1c] sm:$0xf]
    %v74 = vunpack.c.l.b16 %v58
    %v75 = vunpack.c.l.b16 %v59
    %v76 = vunpack.c.l.b16 %v60
    %v77 = vunpack.c.l.b16 %v61
    %v78 = vpack.c.b16 %v75, %v74
    %v79 = vpack.c.b16 %v77, %v76
    %v88 = vunpack.c.l.b16 %v62
    %v89 = vunpack.c.l.b16 %v63
    %v90 = vunpack.c.l.b16 %v64
    %v91 = vunpack.c.l.b16 %v65
    %v92 = vunpack.c.l.b16 %v66
    %v93 = vunpack.c.l.b16 %v67
    %v94 = vunpack.c.l.b16 %v68
    %v95 = vunpack.c.l.b16 %v69
    %v96 = vpack.c.b16 %v89, %v88
    %v97 = vpack.c.b16 %v91, %v90
    %v98 = vpack.c.b16 %v93, %v92
    %v99 = vpack.c.b16 %v95, %v94
    %vm104 = vcmask 523264
    %v106 = vsel %vm104, %v78, 0
    %v109 = vsel %vm104, %v79, 0
    %111 = vmatpush.bf16.msra.mxu0 0
    %112 = vmatpush.bf16.msra.mxu0 0
    %113 = vmatpush.bf16.msra.mxu0 0
    %114 = vmatpush.bf16.msra.mxu0 0
    %115 = vmatpush.bf16.msra.mxu0 %v99
    %116 = vmatpush.bf16.msra.mxu0 %v98
    %117 = vmatpush.bf16.msra.mxu0 %v97
    %118 = vmatpush.bf16.msra.mxu0 %v96
    %119 = vmatmul.bf16.gmra.mxu0 %v106
    %v120 = vpop.f32.mrf.mxu0
    %v121 = vadd.f32 0.0, %v120
    %v122 = vpop.f32.mrf.mxu0
    %v123 = vadd.f32 0.0, %v122
    %124 = vmatmul.bf16.gmra.mxu0 %v109
    %v125 = vpop.f32.mrf.mxu0
    %v126 = vadd.f32 0.0, %v125
    %v127 = vpop.f32.mrf.mxu0
    %v128 = vadd.f32 0.0, %v127
    %129 = vdwg.mxu0
    %v130 = vadd.f32 %v54, %v121
    %v131 = vadd.f32 %v55, %v123
    %v132 = vadd.f32 %v56, %v126
    %v133 = vadd.f32 %v57, %v128
    %134 = vst.msk [vmem:[#allocation2] sm:$0xff] %vm104, %v130
    %135 = vst.msk [vmem:[#allocation2 + $0x8] sm:$0xff] %vm104, %v131
    %136 = vst.msk [vmem:[#allocation2 + $0x10] sm:$0xff] %vm104, %v132
    %137 = vst.msk [vmem:[#allocation2 + $0x18] sm:$0xff] %vm104, %v133
    // Predicated region
    $region22: #{tpu_custom_call.1} parent=1 // pred_check
      %p138 = pneg %p45
    $region23: #{tpu_custom_call.1} parent=1 // pred_check_branch
      %140 = sbr.rel (%p138) target = $region25
    $region24: #{tpu_custom_call.1} parent=1 // pred_region
      %v141 = vld [vmem:[#allocation2] sm:$0xff]
      %v142 = vld [vmem:[#allocation2 + $0x8] sm:$0xff]
      %v143 = vld [vmem:[#allocation2 + $0x10] sm:$0xff]
      %v144 = vld [vmem:[#allocation2 + $0x18] sm:$0xff]
      %v145 = vpack.c.bf16 %v141, %v141
      %v146 = vpack.c.bf16 %v142, %v142
      %v147 = vpack.c.bf16 %v143, %v143
      %v148 = vpack.c.bf16 %v144, %v144
      %vm149 = vcmask 519168
      %150 = vst.msk [vmem:[#allocation8] sm:$0xf] %vm149, %v145
      %151 = vst.msk [vmem:[#allocation8 + $0x4] sm:$0xf] %vm149, %v146
      %152 = vst.msk [vmem:[#allocation8 + $0x8] sm:$0xf] %vm149, %v147
      %153 = vst.msk [vmem:[#allocation8 + $0xc] sm:$0xf] %vm149, %v148
    $region25: #{tpu_custom_call.1} parent=1 // pred_fallthru
      _
    // Predicated region
    $region26: #{tpu_custom_call.1} parent=1 // pred_check
      _
    $region27: #{tpu_custom_call.1} parent=1 // pred_check_branch
      %155 = sbr.rel (0) target = $region29
    $region28: #{tpu_custom_call.1} parent=1 // pred_region
      %157 = vsyncadd [#allocation5], 0
      %s158 = sshll.u32 [#allocation8], 4
      %s159 = int_to_ptr.vmem [resolvable:$true] %s158
      %s160 = sshll.u32 %s2, 4
      %s161 = int_to_ptr.hbm [resolvable:$true] %s160
      %166 = dma.vmem_to_hbm [thread:$0]  %s159, 256, %s161, [#allocation5], 64, 64, 4
    $region29: #{tpu_custom_call.1} parent=1 // pred_fallthru
      _
    // Predicated region
    $region30: #{tpu_custom_call.1} parent=1 // pred_check
      _
    $region31: #{tpu_custom_call.1} parent=1 // pred_check_branch
      %168 = sbr.rel (0) target = $region33
    $region32: #{tpu_custom_call.1} parent=1 // pred_region
      %170 = dma.done [#allocation5], 256
    $region33: #{tpu_custom_call.1} parent=1 // pred_fallthru
      _
    %171 = vsyncpa [#allocation4], 1
    %172 = vsyncpa [#allocation7], 1
    %173 = vsyncpa [#allocation5], 1

</llo_original>
